<compile_context>
chip_gen: v7x
topology: tpu7x:2x2x1
jax: 0.10.0
libtpu: 0.0.40
codegen_flags: <defaults>
</compile_context>

<pallas_src>
import jax
import jax.numpy as jnp
from jax.experimental import pallas as pl
from jax.experimental.pallas import tpu as pltpu

INPUT_SIZE = 4      # CartPole-v1 observation_space.shape[0]
HIDDEN = 24
OUTPUT_SIZE = 2     # CartPole-v1 action_space.n

# --- packed-parameter slab layout (transposed weights, 8-aligned rows) ------
ROW_W1T = 0    # W1^T (24, 4)  : rows  0:24, cols 0:4
ROW_W2T = 24   # W2^T (24, 24) : rows 24:48, cols 0:24
ROW_W3T = 48   # W3^T (2, 24)  : rows 48:50, cols 0:24
ROW_B = 56     # biases column-wise: b1 -> rows 56:80 col 0,
               #                     b2 -> rows 56:80 col 1,
               #                     b3 -> rows 56:58 col 2
SLAB_ROWS, SLAB_COLS = 80, 128   # 80*128*4 B = 40 KiB, trivially VMEM-resident


def dqn_mlp_kernel(x_ref, p_ref, o_ref):
    # x_ref: (4, TB) activation block, batch on lanes (lane-dense).
    # p_ref: (80, 128) packed params, constant index_map -> VMEM-resident.
    # o_ref: (2, TB) Q-values, lane-dense output (unmasked stores).
    x = x_ref[...]

    w1t = p_ref[ROW_W1T:ROW_W1T + HIDDEN, 0:INPUT_SIZE]     # (24, 4)
    w2t = p_ref[ROW_W2T:ROW_W2T + HIDDEN, 0:HIDDEN]         # (24, 24)
    w3t = p_ref[ROW_W3T:ROW_W3T + OUTPUT_SIZE, 0:HIDDEN]    # (2, 24)
    b1 = p_ref[ROW_B:ROW_B + HIDDEN, 0:1]                   # (24, 1)
    b2 = p_ref[ROW_B:ROW_B + HIDDEN, 1:2]                   # (24, 1)
    b3 = p_ref[ROW_B:ROW_B + OUTPUT_SIZE, 2:3]              # (2, 1)

    h1 = jnp.dot(w1t, x, preferred_element_type=jnp.float32) + b1   # (24, TB)
    h1 = jnp.maximum(h1, 0.0)                                        # F.relu
    h2 = jnp.dot(w2t, h1, preferred_element_type=jnp.float32) + b2   # (24, TB)
    h2 = jnp.maximum(h2, 0.0)                                        # F.relu
    q = jnp.dot(w3t, h2, preferred_element_type=jnp.float32) + b3    # (2, TB)
    o_ref[...] = q.astype(o_ref.dtype)


def _round_up(x, m):
    return ((x + m - 1) // m) * m


def _forward_from_slab_jnp(state, slab):
    """Plain-XLA path (small-batch bypass); identical math, no kernel launch."""
    w1t = slab[ROW_W1T:ROW_W1T + HIDDEN, 0:INPUT_SIZE]
    w2t = slab[ROW_W2T:ROW_W2T + HIDDEN, 0:HIDDEN]
    w3t = slab[ROW_W3T:ROW_W3T + OUTPUT_SIZE, 0:HIDDEN]
    b1 = slab[ROW_B:ROW_B + HIDDEN, 0]
    b2 = slab[ROW_B:ROW_B + HIDDEN, 1]
    b3 = slab[ROW_B:ROW_B + OUTPUT_SIZE, 2]
    h1 = jnp.maximum(state @ w1t.T + b1, 0.0)
    h2 = jnp.maximum(h1 @ w2t.T + b2, 0.0)
    return h2 @ w3t.T + b3


def dqn_forward(state, packed_params, *, max_block_b=8192, small_batch=64):
    """state: (B, 4) f32; packed_params: (80, 128) f32 slab. Returns (B, 2)."""
    B = state.shape[0]
    if B < small_batch:
        # Launch + pipeline prologue + padding to 128 lanes is pure overhead
        # for ~100 FLOPs; XLA's fused MLP wins here.
        return _forward_from_slab_jnp(state, packed_params)

    # Lane-dense transposed dataflow: batch on the lane axis.
    # Aim for >= 2 grid blocks (v7x: 2 TensorCores share the "parallel" axis),
    # blocks are multiples of 128 lanes, capped so each step streams a sane DMA.
    block_b = max(128, min(max_block_b, _round_up((B + 1) // 2, 128)))
    n_blocks = pl.cdiv(B, block_b)
    Bp = n_blocks * block_b

    x_t = state.T                       # (4, B) layout plumbing in the wrapper
    if Bp != B:
        x_t = jnp.pad(x_t, ((0, 0), (0, Bp - B)))

    out_t = pl.pallas_call(
        dqn_mlp_kernel,
        out_shape=jax.ShapeDtypeStruct((OUTPUT_SIZE, Bp), jnp.float32),
        grid=(n_blocks,),
        in_specs=[
            # Activation stream: one lane-dense (4, TB) block per grid step.
            pl.BlockSpec((INPUT_SIZE, block_b), lambda i: (0, i)),
            # Packed weights: constant block index -> fetched once, resident.
            pl.BlockSpec((SLAB_ROWS, SLAB_COLS), lambda i: (0, 0)),
        ],
        out_specs=pl.BlockSpec((OUTPUT_SIZE, block_b), lambda i: (0, i)),
        compiler_params=pltpu.CompilerParams(
            dimension_semantics=("parallel",)),
    )(x_t, packed_params)

    # Padded batch columns carry relu(bias)-propagated garbage; slice them off.
    return out_t[:, :B].T


def init_params(key):
    """Deterministic init mirroring nn.Linear shapes (stored as [in, out])."""
    k1, k2, k3, k4, k5, k6 = jax.random.split(key, 6)

    def linear(kw, kb, fan_in, fan_out):
        # PyTorch default: U(-1/sqrt(fan_in), 1/sqrt(fan_in))
        bound = 1.0 / jnp.sqrt(float(fan_in))
        w = jax.random.uniform(kw, (fan_in, fan_out), jnp.float32, -bound, bound)
        b = jax.random.uniform(kb, (fan_out,), jnp.float32, -bound, bound)
        return w, b

    w1, b1 = linear(k1, k2, INPUT_SIZE, HIDDEN)
    w2, b2 = linear(k3, k4, HIDDEN, HIDDEN)
    w3, b3 = linear(k5, k6, HIDDEN, OUTPUT_SIZE)
    return {"w1": w1, "b1": b1, "w2": w2, "b2": b2, "w3": w3, "b3": b3}


def pack_params(params):
    """Pack the six parameter tensors (weights transposed) into one slab."""
    slab = jnp.zeros((SLAB_ROWS, SLAB_COLS), jnp.float32)
    slab = slab.at[ROW_W1T:ROW_W1T + HIDDEN, :INPUT_SIZE].set(params["w1"].T)
    slab = slab.at[ROW_W2T:ROW_W2T + HIDDEN, :HIDDEN].set(params["w2"].T)
    slab = slab.at[ROW_W3T:ROW_W3T + OUTPUT_SIZE, :HIDDEN].set(params["w3"].T)
    slab = slab.at[ROW_B:ROW_B + HIDDEN, 0].set(params["b1"].reshape(-1))
    slab = slab.at[ROW_B:ROW_B + HIDDEN, 1].set(params["b2"].reshape(-1))
    slab = slab.at[ROW_B:ROW_B + OUTPUT_SIZE, 2].set(params["b3"].reshape(-1))
    return slab


def reference_forward(state, params):
    h1 = jnp.maximum(state @ params["w1"] + params["b1"], 0.0)
    h2 = jnp.maximum(h1 @ params["w2"] + params["b2"], 0.0)
    return h2 @ params["w3"] + params["b3"]


if __name__ == "__main__":
    key = jax.random.PRNGKey(0)
    pkey, xkey = jax.random.split(key)

    params = init_params(pkey)
    slab = pack_params(params)

    # Replay-minibatch-sized batch: kernel path, 2 parallel grid blocks.
    B = 512
    state = jax.random.normal(xkey, (B, INPUT_SIZE), dtype=jnp.float32)
    ref = reference_forward(state, params)

    actions = dqn_forward(state, slab)
    jax.block_until_ready(actions)
    assert actions.shape == (B, OUTPUT_SIZE)
    assert jnp.allclose(actions, ref, atol=1e-4, rtol=1e-4)

    # Ragged batch: still goes through the kernel via the padding path.
    ragged = state[:300]
    actions_ragged = dqn_forward(ragged, slab)
    jax.block_until_ready(actions_ragged)
    assert actions_ragged.shape == (300, OUTPUT_SIZE)
    assert jnp.allclose(actions_ragged, ref[:300], atol=1e-4, rtol=1e-4)

    # Tiny batch (single env step): small-batch bypass (no kernel launch).
    small = state[:8]
    actions_small = dqn_forward(small, slab)
    jax.block_until_ready(actions_small)
    assert actions_small.shape == (8, OUTPUT_SIZE)
    assert jnp.allclose(actions_small, ref[:8], atol=1e-4, rtol=1e-4)

    print("KERNEL_OK")
</pallas_src>

<mosaic_0001>
module attributes {stable_mosaic.version = 11 : i64} {
  func.func @dqn_mlp_kernel(%arg0: i32, %arg1: memref<4x256xf32, #tpu.memory_space<vmem>>, %arg2: memref<80x128xf32, #tpu.memory_space<vmem>>, %arg3: memref<2x256xf32, #tpu.memory_space<vmem>>) attributes {dimension_semantics = [#tpu.dimension_semantics<parallel>], iteration_bounds = array<i64: 2>, scalar_prefetch = 0 : i64, scratch_operands = 0 : i64, tpu.core_type = #tpu.core_type<tc>, window_params = [{transform_indices = @transform_0, window_bounds = array<i64: 4, 256>}, {pipeline_mode = #tpu.pipeline_mode<synchronous>, transform_indices = @transform_1, window_bounds = array<i64: 80, 128>}, {transform_indices = @transform_2, window_bounds = array<i64: 2, 256>}]} {
    %c0 = arith.constant 0 : index
    %c0_0 = arith.constant 0 : index
    %0 = vector.load %arg1[%c0, %c0_0] : memref<4x256xf32, #tpu.memory_space<vmem>>, vector<4x256xf32>
    %c0_1 = arith.constant 0 : index
    %c0_2 = arith.constant 0 : index
    %1 = vector.load %arg2[%c0_1, %c0_2] : memref<80x128xf32, #tpu.memory_space<vmem>>, vector<24x4xf32>
    %c24 = arith.constant 24 : index
    %c0_3 = arith.constant 0 : index
    %2 = vector.load %arg2[%c24, %c0_3] : memref<80x128xf32, #tpu.memory_space<vmem>>, vector<24x24xf32>
    %c48 = arith.constant 48 : index
    %c0_4 = arith.constant 0 : index
    %3 = vector.load %arg2[%c48, %c0_4] : memref<80x128xf32, #tpu.memory_space<vmem>>, vector<2x24xf32>
    %c56 = arith.constant 56 : index
    %c0_5 = arith.constant 0 : index
    %4 = vector.load %arg2[%c56, %c0_5] : memref<80x128xf32, #tpu.memory_space<vmem>>, vector<24x1xf32>
    %c56_6 = arith.constant 56 : index
    %c1 = arith.constant 1 : index
    %5 = vector.load %arg2[%c56_6, %c1] : memref<80x128xf32, #tpu.memory_space<vmem>>, vector<24x1xf32>
    %c56_7 = arith.constant 56 : index
    %c2 = arith.constant 2 : index
    %6 = vector.load %arg2[%c56_7, %c2] : memref<80x128xf32, #tpu.memory_space<vmem>>, vector<2x1xf32>
    %cst = arith.constant dense<0.000000e+00> : vector<24x256xf32>
    %7 = tpu.matmul %1, %0, %cst {dimension_numbers = #tpu.dot_dimension_numbers<[1], [0], [0], [1], [0, 0, 1, 1], [], []>} : vector<24x4xf32>, vector<4x256xf32>, vector<24x256xf32> -> vector<24x256xf32>
    %8 = vector.broadcast %4 : vector<24x1xf32> to vector<24x256xf32>
    %9 = arith.addf %7, %8 : vector<24x256xf32>
    %cst_8 = arith.constant 0.000000e+00 : f32
    %10 = vector.broadcast %cst_8 : f32 to vector<24x256xf32>
    %11 = arith.maximumf %9, %10 : vector<24x256xf32>
    %cst_9 = arith.constant dense<0.000000e+00> : vector<24x256xf32>
    %12 = tpu.matmul %2, %11, %cst_9 {dimension_numbers = #tpu.dot_dimension_numbers<[1], [0], [0], [1], [0, 0, 1, 1], [], []>} : vector<24x24xf32>, vector<24x256xf32>, vector<24x256xf32> -> vector<24x256xf32>
    %13 = vector.broadcast %5 : vector<24x1xf32> to vector<24x256xf32>
    %14 = arith.addf %12, %13 : vector<24x256xf32>
    %cst_10 = arith.constant 0.000000e+00 : f32
    %15 = vector.broadcast %cst_10 : f32 to vector<24x256xf32>
    %16 = arith.maximumf %14, %15 : vector<24x256xf32>
    %cst_11 = arith.constant dense<0.000000e+00> : vector<2x256xf32>
    %17 = tpu.matmul %3, %16, %cst_11 {dimension_numbers = #tpu.dot_dimension_numbers<[1], [0], [0], [1], [0, 0, 1, 1], [], []>} : vector<2x24xf32>, vector<24x256xf32>, vector<2x256xf32> -> vector<2x256xf32>
    %18 = vector.broadcast %6 : vector<2x1xf32> to vector<2x256xf32>
    %19 = arith.addf %17, %18 : vector<2x256xf32>
    %c0_12 = arith.constant 0 : index
    %c0_13 = arith.constant 0 : index
    %20 = vector.load %arg3[%c0_12, %c0_13] : memref<2x256xf32, #tpu.memory_space<vmem>>, vector<2x256xf32>
    tpu.vector_store %arg3[%c0_12, %c0_13], %19 {strides = array<i32>} : memref<2x256xf32, #tpu.memory_space<vmem>>, vector<2x256xf32>,
    return
  }
  func.func @transform_0(%arg0: i32) -> (i32, i32) {
    %c0_i32 = arith.constant 0 : i32
    %c0_i32_0 = arith.constant 0 : i32
    return %c0_i32, %arg0 : i32, i32
  }
  func.func @transform_1(%arg0: i32) -> (i32, i32) {
    %c0_i32 = arith.constant 0 : i32
    %c0_i32_0 = arith.constant 0 : i32
    %c0_i32_1 = arith.constant 0 : i32
    return %c0_i32, %c0_i32_0 : i32, i32
  }
  func.func @transform_2(%arg0: i32) -> (i32, i32) {
    %c0_i32 = arith.constant 0 : i32
    %c0_i32_0 = arith.constant 0 : i32
    return %c0_i32, %arg0 : i32, i32
  }
}

</mosaic_0001>

<llo_original>
// kernel: tpu_custom_call.1
$region0: #{tpu_custom_call.1}
  #allocation0 [shape = 'u32[]', space=smem, size = 0x4, offset = 0x4, fixed_abs, tag = 'smem constant byte address 0x4 - core index']
  #allocation1 [shape = 'u32[144,128]{1,0:T(1,128)}', space=vmem, size = 0x12000, scoped, tag = 'internal scratch']
  %s0 = inlined_call_operand.hbm [shape: f32[4,512], index: 0, kind: input, shape index: {}]
  %s1 = inlined_call_operand.hbm [shape: f32[80,128], index: 1, kind: input, shape index: {}]
  %s2 = inlined_call_operand.hbm [shape: f32[2,512], index: 2, kind: output, shape index: {}]
  %s3 = sld [smem:[#allocation0]]
  $region49: #{tpu_custom_call.1} parent=0
    _
  %s5 = ssub.s32 1, %s3
  %s6 = scalar_select 0, %s5, %s3
  $region1: #{tpu_custom_call.1} parent=0
    #allocation2 [shape = 'u8[8192]{0}', space=vmem, size = 0x2000, scoped, tag = 'input window, operand 0']
    #allocation3 [shape = 's32[2]{0}', space=sflag, size = 0x8, scoped, tag = 'scoped memory for tpu_custom_call.1']
    #allocation4 [shape = 's32[2]{0}', space=sflag, size = 0x8, scoped, tag = 'scoped memory for tpu_custom_call.1']
    #allocation5 [shape = 'u8[40960]{0}', space=vmem, size = 0xa000, scoped, tag = 'input window, operand 1, single buffered']
    #allocation6 [shape = 's32[1]{0}', space=sflag, size = 0x4, scoped, tag = 'scoped memory for tpu_custom_call.1']
    #allocation7 [shape = 'u8[4096]{0}', space=vmem, size = 0x1000, scoped, tag = 'output window, operand 0']
    %7 = vsyncpa [#allocation3], 0
    %s8 = scalar_lea.sflag [#allocation3], 1
    %9 = vsyncpa %s8, 0
    %10 = vsyncpa [#allocation6], 0
    %11 = vsyncpa [#allocation4], 0
    %s12 = scalar_lea.sflag [#allocation4], 1
    %13 = vsyncpa %s12, 0
    loop: start=0, step=1, limit=4
    $region2: #{tpu_custom_call.1} parent=1 // loop_pre_header
      _
    $region3: #{tpu_custom_call.1} parent=1 // loop_header
      %s15 = sphi 0, %s19
      %p16 = scmp.ge.s32.totalorder %s15, 4
      %s25 = sphi 0, %s27
      %s28 = sphi 0, %s25
      %s29 = sphi 0, %s28
      %s45 = sphi 0, %s29
      %s49 = sphi 0, %s49
      %s51 = sphi 0, %s49
      %s52 = sphi 0, %s51
      %s66 = sphi 0, %s52
      %s72 = sphi 0, %s74
      %s75 = sphi 0, %s72
      %s76 = sphi 0, %s75
      %s92 = sphi 0, %s76
    $region4: #{tpu_custom_call.1} parent=1 // loop_header_branch
      %18 = sbr.rel (%p16) target = $region8
    $region5: #{tpu_custom_call.1} parent=1 // loop_body
      %s20 = ssub.s32 %s15, 1
      %s21 = ssub.s32 %s15, 2
      %s22 = sadd.s32 %s15, 1
      %s23 = ssub.s32 %s15, %s22
      %p24 = scmp.eq.s32.totalorder %s23, 0
      %s26 = sadd.s32 %s25, 1
      %s27 = scalar_select %p24, %s25, %s26
      %p30 = pneg %p24
      %p31 = scmp.eq.s32.totalorder %s15, 1
      %p32 = por %p30, %p31
      %p33 = scmp.ne.s32.totalorder %s25, %s28
      %p34 = scmp.eq.s32.totalorder %s15, 0
      %p35 = por %p33, %p34
      %p36 = scmp.ne.s32.totalorder %s25, %s28
      %p37 = scmp.eq.s32.totalorder %s20, 1
      %p38 = por %p36, %p37
      %p39 = scmp.ne.s32.totalorder %s28, %s29
      %p40 = scmp.eq.s32.totalorder %s20, 0
      %p41 = por %p39, %p40
      %p42 = scmp.ne.s32.totalorder %s28, %s29
      %p43 = scmp.eq.s32.totalorder %s21, 1
      %p44 = por %p42, %p43
      %p46 = scmp.ne.s32.totalorder %s29, %s45
      %p47 = scmp.eq.s32.totalorder %s21, 0
      %p48 = por %p46, %p47
      %s50 = sadd.s32 %s49, 1
      %p53 = scmp.eq.s32.totalorder %s15, 1
      %p54 = scmp.ne.s32.totalorder %s49, %s51
      %p55 = scmp.eq.s32.totalorder %s15, 0
      %p56 = por %p54, %p55
      %p57 = scmp.ne.s32.totalorder %s49, %s51
      %p58 = scmp.eq.s32.totalorder %s20, 1
      %p59 = por %p57, %p58
      %p60 = scmp.ne.s32.totalorder %s51, %s52
      %p61 = scmp.eq.s32.totalorder %s20, 0
      %p62 = por %p60, %p61
      %p63 = scmp.ne.s32.totalorder %s51, %s52
      %p64 = scmp.eq.s32.totalorder %s21, 1
      %p65 = por %p63, %p64
      %p67 = scmp.ne.s32.totalorder %s52, %s66
      %p68 = scmp.eq.s32.totalorder %s21, 0
      %p69 = por %p67, %p68
      %s70 = ssub.s32 %s15, %s22
      %p71 = scmp.eq.s32.totalorder %s70, 0
      %s73 = sadd.s32 %s72, 1
      %s74 = scalar_select %p71, %s72, %s73
      %p77 = pneg %p71
      %p78 = scmp.eq.s32.totalorder %s15, 1
      %p79 = por %p77, %p78
      %p80 = scmp.ne.s32.totalorder %s72, %s75
      %p81 = scmp.eq.s32.totalorder %s15, 0
      %p82 = por %p80, %p81
      %p83 = scmp.ne.s32.totalorder %s72, %s75
      %p84 = scmp.eq.s32.totalorder %s20, 1
      %p85 = por %p83, %p84
      %p86 = scmp.ne.s32.totalorder %s75, %s76
      %p87 = scmp.eq.s32.totalorder %s20, 0
      %p88 = por %p86, %p87
      %p89 = scmp.ne.s32.totalorder %s75, %s76
      %p90 = scmp.eq.s32.totalorder %s21, 1
      %p91 = por %p89, %p90
      %p93 = scmp.ne.s32.totalorder %s76, %s92
      %p94 = scmp.eq.s32.totalorder %s21, 0
      %p95 = por %p93, %p94
      %p96 = scmp.le.s32.totalorder 1, %s15
      %p97 = scmp.lt.s32.totalorder %s15, 3
      %p98 = pnand %p96, %p97
      %p99 = pneg %p98
      // Predicated region
      $region9: #{tpu_custom_call.1} parent=5 // pred_check
        _
      $region10: #{tpu_custom_call.1} parent=5 // pred_check_branch
        %101 = sbr.rel (%p98) target = $region12
      $region11: #{tpu_custom_call.1} parent=5 // pred_region
        %s102 = ssub.s32 %s15, 1
        // Predicated region
        $region13: #{tpu_custom_call.1} parent=11 // pred_check
          %p103 = pneg %p62
        $region14: #{tpu_custom_call.1} parent=11 // pred_check_branch
          %105 = sbr.rel (%p103) target = $region16
        $region15: #{tpu_custom_call.1} parent=11 // pred_region
          %s107 = ssub.s32 1280, 1280
          %108 = vsyncadd [#allocation6], %s107
          %s109 = sshll.u32 [#allocation5], 4
          %s110 = int_to_ptr.vmem [resolvable:$true] %s109
          %115 = dma.hbm_to_vmem [thread:$0]  %s1, 1280, %s110, [#allocation6], 128, 128, 8
        $region16: #{tpu_custom_call.1} parent=11 // pred_fallthru
          _
      $region12: #{tpu_custom_call.1} parent=5 // pred_fallthru
        _
      %p116 = scmp.lt.s32.totalorder %s15, 2
      // Predicated region
      $region17: #{tpu_custom_call.1} parent=5 // pred_check
        %p117 = pneg %p116
      $region18: #{tpu_custom_call.1} parent=5 // pred_check_branch
        %119 = sbr.rel (%p117) target = $region20
      $region19: #{tpu_custom_call.1} parent=5 // pred_region
        // Predicated region
        $region21: #{tpu_custom_call.1} parent=19 // pred_check
          %p120 = pneg %p35
        $region22: #{tpu_custom_call.1} parent=19 // pred_check_branch
          %122 = sbr.rel (%p120) target = $region24
        $region23: #{tpu_custom_call.1} parent=19 // pred_region
          %s123 = sand.u32 %s25, 1
          %s124 = scalar_lea.sflag [#allocation3], %s123
          %s125 = sand.u32 %s25, 1
          %s126 = smul.addr %s125, 8
          %s127 = scalar_lea.vmem [#allocation2], %s126
          %s128 = smul.u32 2, %s15
          %s130 = ssub.s32 128, 128
          %131 = vsyncadd %s124, %s130
          %s132 = smul.addr %s128, 64
          %s133 = scalar_lea.hbm %s0, %s132
          %s135 = sshll.u32 %s127, 4
          %s136 = int_to_ptr.vmem [resolvable:$true] %s135
          %138 = dma.hbm_to_vmem [thread:$0]  %s133, 128, %s136, %s124
        $region24: #{tpu_custom_call.1} parent=19 // pred_fallthru
          _
      $region20: #{tpu_custom_call.1} parent=5 // pred_fallthru
        _
      %p139 = scmp.le.s32.totalorder 1, %s15
      %p140 = scmp.lt.s32.totalorder %s15, 3
      %p141 = pnand %p139, %p140
      %p142 = pneg %p141
      // Predicated region
      $region25: #{tpu_custom_call.1} parent=5 // pred_check
        _
      $region26: #{tpu_custom_call.1} parent=5 // pred_check_branch
        %144 = sbr.rel (%p141) target = $region28
      $region27: #{tpu_custom_call.1} parent=5 // pred_region
        %s145 = ssub.s32 %s15, 1
        %s146 = sand.u32 %s28, 1
        %s147 = scalar_lea.sflag [#allocation3], %s146
        %s148 = sand.u32 %s28, 1
        %s149 = smul.addr %s148, 8
        %s150 = scalar_lea.vmem [#allocation2], %s149
        // Predicated region
        $region29: #{tpu_custom_call.1} parent=27 // pred_check
          %p151 = pneg %p41
        $region30: #{tpu_custom_call.1} parent=27 // pred_check_branch
          %153 = sbr.rel (%p151) target = $region32
        $region31: #{tpu_custom_call.1} parent=27 // pred_region
          %154 = dma.done %s147, 128
        $region32: #{tpu_custom_call.1} parent=27 // pred_fallthru
          _
        // Predicated region
        $region33: #{tpu_custom_call.1} parent=27 // pred_check
          %p155 = pneg %p62
        $region34: #{tpu_custom_call.1} parent=27 // pred_check_branch
          %157 = sbr.rel (%p155) target = $region36
        $region35: #{tpu_custom_call.1} parent=27 // pred_region
          %158 = dma.done [#allocation6], 1280
        $region36: #{tpu_custom_call.1} parent=27 // pred_fallthru
          _
        %s159 = sand.u32 %s28, 1
        %s160 = scalar_lea.sflag [#allocation3], %s159
        %s161 = sand.u32 %s28, 1
        %s162 = smul.addr %s161, 8
        %s163 = scalar_lea.vmem [#allocation2], %s162
        %p164 = pneg %p41
        %p165 = pneg %p38
        %p166 = pneg %p62
        %p167 = pneg %p59
        %p168 = pneg %p88
        %p169 = pneg %p85
        %s170 = sand.u32 %s75, 1
        %s171 = scalar_lea.sflag [#allocation4], %s170
        %s172 = sand.u32 %s75, 1
        %s173 = smul.addr %s172, 4
        %s174 = scalar_lea.vmem [#allocation7], %s173
        %s175 = smul.u32 2, %s20
        %s176 = smul.u32 2, %s20
        %v177 = vld [vmem:[%s150] sm:$0xff]
        %v178 = vld [vmem:[#allocation5] sm:$0xff]
        %v179 = vld [vmem:[#allocation5 + $0x8] sm:$0xff]
        %v180 = vld [vmem:[#allocation5 + $0x10] sm:$0xff]
        %v181 = vld [vmem:[#allocation5 + $0x18] sm:$0xff]
        %v182 = vld [vmem:[#allocation5 + $0x20] sm:$0xff]
        %v183 = vld [vmem:[#allocation5 + $0x28] sm:$0xff]
        %v184 = vld [vmem:[#allocation5 + $0x30] sm:$0x3]
        %v185 = vld [vmem:[#allocation5 + $0x38] sm:$0xff]
        %v186 = vld [vmem:[#allocation5 + $0x40] sm:$0xff]
        %v187 = vld [vmem:[#allocation5 + $0x48] sm:$0xff]
        %v188 = vld [vmem:[#allocation5 + $0x38] sm:$0x3]
        %190 = vset.pattern.permute.xlu0 0
        %191 = vperm.xlu0 %190, %v185
        %v192 = vpop.permute.xlu0 %191
        %195 = vset.pattern.permute.xlu0 0
        %196 = vperm.xlu0 %195, %v186
        %v197 = vpop.permute.xlu0 %196
        %200 = vset.pattern.permute.xlu0 0
        %201 = vperm.xlu0 %200, %v187
        %v202 = vpop.permute.xlu0 %201
        %v205 = vcombine.high %v177, %v177
        %vm206 = vcmask 31744
        %v208 = vsel %vm206, %v178, 0
        %v211 = vsel %vm206, %v179, 0
        %v214 = vsel %vm206, %v180, 0
        %vm216 = vcmask 1043456
        %v217 = vsel %vm216, %v177, 0
        %v219 = vsel %vm216, %v205, 0
        %221 = vmatprep.subr.mxu0 %v219
        %222 = vmatpush1.msra.mxu0 %v217
        %223 = vmatprep.subr.mxu0 0.0
        %224 = vmatpush1.msra.mxu0 0.0
        %225 = vmatprep.subr.mxu0 0.0
        %226 = vmatpush1.msra.mxu0 0.0
        %227 = vmatprep.subr.mxu0 0.0
        %228 = vmatpush1.msra.mxu0 0.0
        %229 = vmatprep.subr.mxu0 0.0
        %230 = vmatpush1.msra.mxu0 0.0
        %231 = vmatprep.subr.mxu0 0.0
        %232 = vmatpush1.msra.mxu0 0.0
        %233 = vmatprep.subr.mxu0 0.0
        %234 = vmatpush1.msra.mxu0 0.0
        %235 = vmatprep.subr.mxu0 0.0
        %236 = vmatpush1.msra.mxu0 0.0
        %237 = vmatprep.subr.mxu0 0.0
        %238 = vmatpush1.msra.mxu0 0.0
        %239 = vmatprep.subr.mxu0 0.0
        %240 = vmatpush1.msra.mxu0 0.0
        %241 = vmatprep.subr.mxu0 0.0
        %242 = vmatpush1.msra.mxu0 0.0
        %243 = vmatprep.subr.mxu0 0.0
        %244 = vmatpush1.msra.mxu0 0.0
        %245 = vmatprep.subr.mxu0 0.0
        %246 = vmatpush1.msra.mxu0 0.0
        %247 = vmatprep.subr.mxu0 0.0
        %248 = vmatpush1.msra.mxu0 0.0
        %249 = vmatprep.subr.mxu0 0.0
        %250 = vmatpush1.msra.mxu0 0.0
        %251 = vmatprep.subr.mxu0 0.0
        %252 = vmatpush1.msra.mxu0 0.0
        %253 = vmatprep.subr.mxu0 0.0
        %254 = vmatpush1.msra.mxu0 0.0
        %255 = vmatprep.subr.mxu0 0.0
        %256 = vmatpush1.msra.mxu0 0.0
        %257 = vmatprep.subr.mxu0 0.0
        %258 = vmatpush1.msra.mxu0 0.0
        %259 = vmatprep.subr.mxu0 0.0
        %260 = vmatpush1.msra.mxu0 0.0
        %261 = vmatprep.subr.mxu0 0.0
        %262 = vmatpush1.msra.mxu0 0.0
        %263 = vmatprep.subr.mxu0 0.0
        %264 = vmatpush1.msra.mxu0 0.0
        %265 = vmatprep.subr.mxu0 0.0
        %266 = vmatpush1.msra.mxu0 0.0
        %267 = vmatprep.subr.mxu0 0.0
        %268 = vmatpush1.msra.mxu0 0.0
        %269 = vmatprep.subr.mxu0 0.0
        %270 = vmatpush1.msra.mxu0 0.0
        %271 = vmatprep.subr.mxu0 0.0
        %272 = vmatpush1.msra.mxu0 0.0
        %273 = vmatprep.subr.mxu0 0.0
        %274 = vmatpush1.msra.mxu0 0.0
        %275 = vmatprep.subr.mxu0 0.0
        %276 = vmatpush1.msra.mxu0 0.0
        %277 = vmatprep.subr.mxu0 0.0
        %278 = vmatpush1.msra.mxu0 0.0
        %279 = vmatprep.subr.mxu0 0.0
        %280 = vmatpush1.msra.mxu0 0.0
        %281 = vmatprep.subr.mxu0 0.0
        %282 = vmatpush1.msra.mxu0 0.0
        %283 = vmatprep.subr.mxu0 0.0
        %284 = vmatpush1.msra.mxu0 0.0
        %285 = vmatprep.mubr.f32.mxu0 0.0
        %286 = vmatmul.mubr.f32.gmra.mrb[0].mxu0 %v208
        %v287 = vpop.f32.mrb[0].mxu0
        %v288 = vadd.f32 %v192, %v287
        %v289 = vpop.f32.mrb[0].mxu0
        %v290 = vadd.f32 %v192, %v289
        %291 = vmatprep.mubr.f32.mxu0 0.0
        %292 = vmatmul.mubr.f32.gmra.mrb[0].mxu0 %v211
        %v293 = vpop.f32.mrb[0].mxu0
        %v294 = vadd.f32 %v197, %v293
        %v295 = vpop.f32.mrb[0].mxu0
        %v296 = vadd.f32 %v197, %v295
        %297 = vmatprep.mubr.f32.mxu0 0.0
        %298 = vmatmul.mubr.f32.gmra.mrb[0].mxu0 %v214
        %v299 = vpop.f32.mrb[0].mxu0
        %v300 = vadd.f32 %v202, %v299
        %v301 = vpop.f32.mrb[0].mxu0
        %v302 = vadd.f32 %v202, %v301
        %303 = vdwg.mxu0
        %v304 = vmax.f32 %v288, 0.0
        %v305 = vmax.f32 %v290, 0.0
        %v306 = vmax.f32 %v294, 0.0
        %v307 = vmax.f32 %v296, 0.0
        %v308 = vmax.f32 %v300, 0.0
        %v309 = vmax.f32 %v302, 0.0
        %310 = vset.pattern.permute.xlu0 1
        %311 = vperm.xlu0 %310, %v185
        %v312 = vpop.permute.xlu0 %311
        %314 = vset.pattern.permute.xlu0 1
        %315 = vperm.xlu0 %314, %v186
        %v316 = vpop.permute.xlu0 %315
        %318 = vset.pattern.permute.xlu0 1
        %319 = vperm.xlu0 %318, %v187
        %v320 = vpop.permute.xlu0 %319
        %vm322 = vcmask 195584
        %v324 = vsel %vm322, %v181, 0
        %v327 = vsel %vm322, %v182, 0
        %v330 = vsel %vm322, %v183, 0
        %332 = vmatprep.subr.mxu0 %v305
        %333 = vmatpush1.msra.mxu0 %v304
        %334 = vmatprep.subr.mxu0 %v307
        %335 = vmatpush1.msra.mxu0 %v306
        %336 = vmatprep.subr.mxu0 %v309
        %337 = vmatpush1.msra.mxu0 %v308
        %338 = vmatprep.subr.mxu0 0.0
        %339 = vmatpush1.msra.mxu0 0.0
        %340 = vmatprep.subr.mxu0 0.0
        %341 = vmatpush1.msra.mxu0 0.0
        %342 = vmatprep.subr.mxu0 0.0
        %343 = vmatpush1.msra.mxu0 0.0
        %344 = vmatprep.subr.mxu0 0.0
        %345 = vmatpush1.msra.mxu0 0.0
        %346 = vmatprep.subr.mxu0 0.0
        %347 = vmatpush1.msra.mxu0 0.0
        %348 = vmatprep.subr.mxu0 0.0
        %349 = vmatpush1.msra.mxu0 0.0
        %350 = vmatprep.subr.mxu0 0.0
        %351 = vmatpush1.msra.mxu0 0.0
        %352 = vmatprep.subr.mxu0 0.0
        %353 = vmatpush1.msra.mxu0 0.0
        %354 = vmatprep.subr.mxu0 0.0
        %355 = vmatpush1.msra.mxu0 0.0
        %356 = vmatprep.subr.mxu0 0.0
        %357 = vmatpush1.msra.mxu0 0.0
        %358 = vmatprep.subr.mxu0 0.0
        %359 = vmatpush1.msra.mxu0 0.0
        %360 = vmatprep.subr.mxu0 0.0
        %361 = vmatpush1.msra.mxu0 0.0
        %362 = vmatprep.subr.mxu0 0.0
        %363 = vmatpush1.msra.mxu0 0.0
        %364 = vmatprep.subr.mxu0 0.0
        %365 = vmatpush1.msra.mxu0 0.0
        %366 = vmatprep.subr.mxu0 0.0
        %367 = vmatpush1.msra.mxu0 0.0
        %368 = vmatprep.subr.mxu0 0.0
        %369 = vmatpush1.msra.mxu0 0.0
        %370 = vmatprep.subr.mxu0 0.0
        %371 = vmatpush1.msra.mxu0 0.0
        %372 = vmatprep.subr.mxu0 0.0
        %373 = vmatpush1.msra.mxu0 0.0
        %374 = vmatprep.subr.mxu0 0.0
        %375 = vmatpush1.msra.mxu0 0.0
        %376 = vmatprep.subr.mxu0 0.0
        %377 = vmatpush1.msra.mxu0 0.0
        %378 = vmatprep.subr.mxu0 0.0
        %379 = vmatpush1.msra.mxu0 0.0
        %380 = vmatprep.subr.mxu0 0.0
        %381 = vmatpush1.msra.mxu0 0.0
        %382 = vmatprep.subr.mxu0 0.0
        %383 = vmatpush1.msra.mxu0 0.0
        %384 = vmatprep.subr.mxu0 0.0
        %385 = vmatpush1.msra.mxu0 0.0
        %386 = vmatprep.subr.mxu0 0.0
        %387 = vmatpush1.msra.mxu0 0.0
        %388 = vmatprep.subr.mxu0 0.0
        %389 = vmatpush1.msra.mxu0 0.0
        %390 = vmatprep.subr.mxu0 0.0
        %391 = vmatpush1.msra.mxu0 0.0
        %392 = vmatprep.subr.mxu0 0.0
        %393 = vmatpush1.msra.mxu0 0.0
        %394 = vmatprep.subr.mxu0 0.0
        %395 = vmatpush1.msra.mxu0 0.0
        %396 = vmatprep.mubr.f32.mxu0 0.0
        %397 = vmatmul.mubr.f32.gmra.mrb[0].mxu0 %v324
        %v398 = vpop.f32.mrb[0].mxu0
        %v399 = vadd.f32 %v312, %v398
        %v400 = vpop.f32.mrb[0].mxu0
        %v401 = vadd.f32 %v312, %v400
        %402 = vmatprep.mubr.f32.mxu0 0.0
        %403 = vmatmul.mubr.f32.gmra.mrb[0].mxu0 %v327
        %v404 = vpop.f32.mrb[0].mxu0
        %v405 = vadd.f32 %v316, %v404
        %v406 = vpop.f32.mrb[0].mxu0
        %v407 = vadd.f32 %v316, %v406
        %408 = vmatprep.mubr.f32.mxu0 0.0
        %409 = vmatmul.mubr.f32.gmra.mrb[0].mxu0 %v330
        %v410 = vpop.f32.mrb[0].mxu0
        %v411 = vadd.f32 %v320, %v410
        %v412 = vpop.f32.mrb[0].mxu0
        %v413 = vadd.f32 %v320, %v412
        %414 = vdwg.mxu0
        %v415 = vmax.f32 %v399, 0.0
        %v416 = vmax.f32 %v401, 0.0
        %v417 = vmax.f32 %v405, 0.0
        %v418 = vmax.f32 %v407, 0.0
        %v419 = vmax.f32 %v411, 0.0
        %v420 = vmax.f32 %v413, 0.0
        %422 = vset.pattern.permute.xlu0 2
        %423 = vperm.xlu0 %422, %v188
        %v424 = vpop.permute.xlu0 %423
        %v427 = vsel %vm322, %v184, 0
        %429 = vmatprep.subr.mxu0 %v416
        %430 = vmatpush1.msra.mxu0 %v415
        %431 = vmatprep.subr.mxu0 %v418
        %432 = vmatpush1.msra.mxu0 %v417
        %433 = vmatprep.subr.mxu0 %v420
        %434 = vmatpush1.msra.mxu0 %v419
        %435 = vmatprep.subr.mxu0 0.0
        %436 = vmatpush1.msra.mxu0 0.0
        %437 = vmatprep.subr.mxu0 0.0
        %438 = vmatpush1.msra.mxu0 0.0
        %439 = vmatprep.subr.mxu0 0.0
        %440 = vmatpush1.msra.mxu0 0.0
        %441 = vmatprep.subr.mxu0 0.0
        %442 = vmatpush1.msra.mxu0 0.0
        %443 = vmatprep.subr.mxu0 0.0
        %444 = vmatpush1.msra.mxu0 0.0
        %445 = vmatprep.subr.mxu0 0.0
        %446 = vmatpush1.msra.mxu0 0.0
        %447 = vmatprep.subr.mxu0 0.0
        %448 = vmatpush1.msra.mxu0 0.0
        %449 = vmatprep.subr.mxu0 0.0
        %450 = vmatpush1.msra.mxu0 0.0
        %451 = vmatprep.subr.mxu0 0.0
        %452 = vmatpush1.msra.mxu0 0.0
        %453 = vmatprep.subr.mxu0 0.0
        %454 = vmatpush1.msra.mxu0 0.0
        %455 = vmatprep.subr.mxu0 0.0
        %456 = vmatpush1.msra.mxu0 0.0
        %457 = vmatprep.subr.mxu0 0.0
        %458 = vmatpush1.msra.mxu0 0.0
        %459 = vmatprep.subr.mxu0 0.0
        %460 = vmatpush1.msra.mxu0 0.0
        %461 = vmatprep.subr.mxu0 0.0
        %462 = vmatpush1.msra.mxu0 0.0
        %463 = vmatprep.subr.mxu0 0.0
        %464 = vmatpush1.msra.mxu0 0.0
        %465 = vmatprep.subr.mxu0 0.0
        %466 = vmatpush1.msra.mxu0 0.0
        %467 = vmatprep.subr.mxu0 0.0
        %468 = vmatpush1.msra.mxu0 0.0
        %469 = vmatprep.subr.mxu0 0.0
        %470 = vmatpush1.msra.mxu0 0.0
        %471 = vmatprep.subr.mxu0 0.0
        %472 = vmatpush1.msra.mxu0 0.0
        %473 = vmatprep.subr.mxu0 0.0
        %474 = vmatpush1.msra.mxu0 0.0
        %475 = vmatprep.subr.mxu0 0.0
        %476 = vmatpush1.msra.mxu0 0.0
        %477 = vmatprep.subr.mxu0 0.0
        %478 = vmatpush1.msra.mxu0 0.0
        %479 = vmatprep.subr.mxu0 0.0
        %480 = vmatpush1.msra.mxu0 0.0
        %481 = vmatprep.subr.mxu0 0.0
        %482 = vmatpush1.msra.mxu0 0.0
        %483 = vmatprep.subr.mxu0 0.0
        %484 = vmatpush1.msra.mxu0 0.0
        %485 = vmatprep.subr.mxu0 0.0
        %486 = vmatpush1.msra.mxu0 0.0
        %487 = vmatprep.subr.mxu0 0.0
        %488 = vmatpush1.msra.mxu0 0.0
        %489 = vmatprep.subr.mxu0 0.0
        %490 = vmatpush1.msra.mxu0 0.0
        %491 = vmatprep.subr.mxu0 0.0
        %492 = vmatpush1.msra.mxu0 0.0
        %493 = vmatprep.mubr.f32.mxu0 0.0
        %494 = vmatmul.mubr.f32.gmra.mrb[0].mxu0 %v427
        %v495 = vpop.f32.mrb[0].mxu0
        %v496 = vadd.f32 %v424, %v495
        %v497 = vpop.f32.mrb[0].mxu0
        %v498 = vadd.f32 %v424, %v497
        %499 = vdwg.mxu0
        %v502 = vcombine.low %v496, %v498
        %v504 = vunpack.c.l.s4 1983009808
        %v505 = vunpack.c.0.s8 %v504
        %v506 = vlaneseq
        %v507 = vshrl.u32 %v506, 7
        %v508 = vsub.s32 %v505, %v507
        %v509 = vrot.slane %v502, %v508
        %511 = vst [vmem:[%s174] sm:$0xf] %v509
        %s512 = sand.u32 %s75, 1
        %s513 = scalar_lea.sflag [#allocation4], %s512
        %s514 = sand.u32 %s75, 1
        %s515 = smul.addr %s514, 4
        %s516 = scalar_lea.vmem [#allocation7], %s515
        // Predicated region
        $region37: #{tpu_custom_call.1} parent=27 // pred_check
          %p517 = pneg %p85
        $region38: #{tpu_custom_call.1} parent=27 // pred_check_branch
          %519 = sbr.rel (%p517) target = $region40
        $region39: #{tpu_custom_call.1} parent=27 // pred_region
          %s520 = smul.u32 2, %s20
          %s522 = ssub.s32 64, 64
          %523 = vsyncadd %s513, %s522
          %s524 = smul.addr %s520, 32
          %s525 = scalar_lea.hbm %s2, %s524
          %s527 = sshll.u32 %s516, 4
          %s528 = int_to_ptr.vmem [resolvable:$true] %s527
          %530 = dma.vmem_to_hbm [thread:$0]  %s528, 64, %s525, %s513
        $region40: #{tpu_custom_call.1} parent=27 // pred_fallthru
          _
      $region28: #{tpu_custom_call.1} parent=5 // pred_fallthru
        _
      %p531 = scmp.le.s32.totalorder 2, %s15
      // Predicated region
      $region41: #{tpu_custom_call.1} parent=5 // pred_check
        %p532 = pneg %p531
      $region42: #{tpu_custom_call.1} parent=5 // pred_check_branch
        %534 = sbr.rel (%p532) target = $region44
      $region43: #{tpu_custom_call.1} parent=5 // pred_region
        %s535 = ssub.s32 %s15, 2
        // Predicated region
        $region45: #{tpu_custom_call.1} parent=43 // pred_check
          %p536 = pneg %p91
        $region46: #{tpu_custom_call.1} parent=43 // pred_check_branch
          %538 = sbr.rel (%p536) target = $region48
        $region47: #{tpu_custom_call.1} parent=43 // pred_region
          %s539 = sand.u32 %s76, 1
          %s540 = scalar_lea.sflag [#allocation4], %s539
          %s541 = sand.u32 %s76, 1
          %s542 = smul.addr %s541, 4
          %s543 = scalar_lea.vmem [#allocation7], %s542
          %544 = dma.done %s540, 64
        $region48: #{tpu_custom_call.1} parent=43 // pred_fallthru
          _
      $region44: #{tpu_custom_call.1} parent=5 // pred_fallthru
        _
    $region6: #{tpu_custom_call.1} parent=1 // loop_footer
      %s19 = sadd.s32 1, %s15
    $region7: #{tpu_custom_call.1} parent=1 // loop_footer_branch
      %14 = sbr.rel target = $region3
    $region8: #{tpu_custom_call.1} parent=1 // loop_exit
      _
    %545 = vsyncpa [#allocation3], 1
    %s546 = scalar_lea.sflag [#allocation3], 1
    %547 = vsyncpa %s546, 1
    %548 = vsyncpa [#allocation6], 1
    %549 = vsyncpa [#allocation4], 1
    %s550 = scalar_lea.sflag [#allocation4], 1
    %551 = vsyncpa %s550, 1

</llo_original>
